<compile_context>
chip_gen: v7x
topology: tpu7x:2x2x1
jax: 0.10.0
libtpu: 0.0.40
codegen_flags: <defaults>
</compile_context>

<pallas_src>
import functools

import jax
import jax.numpy as jnp
from jax.experimental import pallas as pl
from jax.experimental.pallas import tpu as pltpu

_LANE = 128


def _round_up(n: int, m: int) -> int:
    return ((n + m - 1) // m) * m


def softmax_head_kernel(x_ref, w_ref, b_ref, o_ref):
    # Linear: [TB, Dp] @ [Dp, Cp] + [1, Cp] -> [TB, Cp]  (MXU, f32 accumulate)
    logits = jnp.dot(x_ref[...], w_ref[...], preferred_element_type=jnp.float32)
    logits = logits + b_ref[...]  # broadcast bias over batch rows

    # Numerically stable log-softmax over the last axis:
    #   lse_full = max(z) + log(sum(exp(z - max(z))));   y = z - lse_full
    m = jnp.max(logits, axis=-1, keepdims=True)
    lse_full = m + jnp.log(jnp.sum(jnp.exp(logits - m), axis=-1, keepdims=True))
    o_ref[...] = (logits - lse_full).astype(o_ref.dtype)


@functools.partial(jax.jit, static_argnames=("block_b", "vmem_limit_bytes"))
def softmax_head(x, weight, bias, *, block_b: int = 512,
                 vmem_limit_bytes: int | None = None):
    """x: [B, D], weight: [D, C], bias: [C]  ->  log-probs [B, C]."""
    B, D = x.shape
    Dw, C = weight.shape
    assert D == Dw, (D, Dw)

    # Lane-align feature / class dims; sublane-align the batch tile.
    Dp = _round_up(D, _LANE)
    Cp = _round_up(C, _LANE)
    TB = min(_round_up(B, 8), _round_up(block_b, 8))
    Bp = _round_up(B, TB)

    # Zero-pad x rows/cols and W rows (zero contributions to the matmul).
    # Padded classes get a huge negative bias so exp() underflows to 0 and
    # they never affect the row max or the logsumexp.
    x_p = jnp.zeros((Bp, Dp), x.dtype).at[:B, :D].set(x)
    w_p = jnp.zeros((Dp, Cp), weight.dtype).at[:D, :C].set(weight)
    b_p = (jnp.full((1, Cp), -1e30, dtype=jnp.float32)
           .at[0, :C].set(bias.astype(jnp.float32)))

    grid = (Bp // TB,)
    out_padded = pl.pallas_call(
        softmax_head_kernel,
        out_shape=jax.ShapeDtypeStruct((Bp, Cp), x.dtype),
        grid_spec=pltpu.PrefetchScalarGridSpec(
            num_scalar_prefetch=0,
            grid=grid,
            in_specs=[
                # x: step over batch tiles.
                pl.BlockSpec((TB, Dp), lambda i: (i, 0)),
                # W, bias: constant index_map -> stay VMEM-resident across tiles.
                pl.BlockSpec((Dp, Cp), lambda i: (0, 0)),
                pl.BlockSpec((1, Cp), lambda i: (0, 0)),
            ],
            out_specs=pl.BlockSpec((TB, Cp), lambda i: (i, 0)),
        ),
        compiler_params=pltpu.CompilerParams(
            # Batch tiles are independent -> shard across TCs on v7x megacore.
            dimension_semantics=("parallel",),
            # Raise for large tiles; defaults are fine at these shapes.
            vmem_limit_bytes=vmem_limit_bytes,
        ),
    )(x_p, w_p, b_p)

    return out_padded[:B, :C]


if __name__ == "__main__":
    # Small shapes consistent with the module: input_length=32, num_classes=16.
    # B=64 with block_b=16 gives a 4-step batch grid so the pipeline is
    # actually exercised.
    B, D, C = 64, 32, 16

    key = jax.random.PRNGKey(0)
    kx, kw, kb = jax.random.split(key, 3)

    x = jax.random.normal(kx, (B, D), dtype=jnp.float32)
    # Deterministic param init (PyTorch Linear default is uniform); shapes
    # match nn.Linear(D, C) with weight stored transposed as [D, C].
    bound = 1.0 / (D ** 0.5)
    weight = jax.random.uniform(kw, (D, C), dtype=jnp.float32,
                                minval=-bound, maxval=bound)
    bias = jax.random.uniform(kb, (C,), dtype=jnp.float32,
                              minval=-bound, maxval=bound)

    out = softmax_head(x, weight, bias, block_b=16)
    jax.block_until_ready(out)

    # Sanity check against pure-JAX reference.
    ref = jax.nn.log_softmax(x @ weight + bias, axis=-1)
    assert out.shape == (B, C)
    assert jnp.allclose(out, ref, atol=1e-5, rtol=1e-5)
    # Log-softmax rows should exp-sum to 1.
    assert jnp.allclose(jnp.sum(jnp.exp(out), axis=-1), 1.0, atol=1e-5)

    print("KERNEL_OK")
</pallas_src>

<mosaic_0001>
module attributes {stable_mosaic.version = 11 : i64} {
  func.func @softmax_head_kernel(%arg0: i32, %arg1: memref<16x128xf32, #tpu.memory_space<vmem>>, %arg2: memref<128x128xf32, #tpu.memory_space<vmem>>, %arg3: memref<1x128xf32, #tpu.memory_space<vmem>>, %arg4: memref<16x128xf32, #tpu.memory_space<vmem>>) attributes {dimension_semantics = [#tpu.dimension_semantics<parallel>], iteration_bounds = array<i64: 4>, scalar_prefetch = 0 : i64, scratch_operands = 0 : i64, tpu.core_type = #tpu.core_type<tc>, window_params = [{transform_indices = @transform_0, window_bounds = array<i64: 16, 128>}, {pipeline_mode = #tpu.pipeline_mode<synchronous>, transform_indices = @transform_1, window_bounds = array<i64: 128, 128>}, {pipeline_mode = #tpu.pipeline_mode<synchronous>, transform_indices = @transform_2, window_bounds = array<i64: 1, 128>}, {transform_indices = @transform_3, window_bounds = array<i64: 16, 128>}]} {
    %c0 = arith.constant 0 : index
    %c0_0 = arith.constant 0 : index
    %0 = vector.load %arg1[%c0, %c0_0] : memref<16x128xf32, #tpu.memory_space<vmem>>, vector<16x128xf32>
    %c0_1 = arith.constant 0 : index
    %c0_2 = arith.constant 0 : index
    %1 = vector.load %arg2[%c0_1, %c0_2] : memref<128x128xf32, #tpu.memory_space<vmem>>, vector<128x128xf32>
    %cst = arith.constant dense<0.000000e+00> : vector<16x128xf32>
    %2 = tpu.matmul %0, %1, %cst {dimension_numbers = #tpu.dot_dimension_numbers<[1], [0], [0], [1], [0, 0, 1, 1], [], []>} : vector<16x128xf32>, vector<128x128xf32>, vector<16x128xf32> -> vector<16x128xf32>
    %c0_3 = arith.constant 0 : index
    %c0_4 = arith.constant 0 : index
    %3 = vector.load %arg3[%c0_3, %c0_4] : memref<1x128xf32, #tpu.memory_space<vmem>>, vector<1x128xf32>
    %4 = vector.broadcast %3 : vector<1x128xf32> to vector<16x128xf32>
    %5 = arith.addf %2, %4 : vector<16x128xf32>
    %cst_5 = arith.constant dense<0xFF800000> : vector<16xf32>
    %6 = vector.multi_reduction <maximumf>, %5, %cst_5 [1] : vector<16x128xf32> to vector<16xf32>
    %7 = vector.shape_cast %6 : vector<16xf32> to vector<16x1xf32>
    %8 = vector.broadcast %7 : vector<16x1xf32> to vector<16x128xf32>
    %9 = arith.subf %5, %8 : vector<16x128xf32>
    %10 = math.exp %9 : vector<16x128xf32>
    %cst_6 = arith.constant dense<0.000000e+00> : vector<16xf32>
    %11 = vector.multi_reduction <add>, %10, %cst_6 [1] : vector<16x128xf32> to vector<16xf32>
    %12 = vector.shape_cast %11 : vector<16xf32> to vector<16x1xf32>
    %13 = math.log %12 : vector<16x1xf32>
    %14 = arith.addf %7, %13 : vector<16x1xf32>
    %15 = vector.broadcast %14 : vector<16x1xf32> to vector<16x128xf32>
    %16 = arith.subf %5, %15 : vector<16x128xf32>
    %c0_7 = arith.constant 0 : index
    %c0_8 = arith.constant 0 : index
    %17 = vector.load %arg4[%c0_7, %c0_8] : memref<16x128xf32, #tpu.memory_space<vmem>>, vector<16x128xf32>
    tpu.vector_store %arg4[%c0_7, %c0_8], %16 {strides = array<i32>} : memref<16x128xf32, #tpu.memory_space<vmem>>, vector<16x128xf32>,
    return
  }
  func.func @transform_0(%arg0: i32) -> (i32, i32) {
    %c0_i32 = arith.constant 0 : i32
    %c0_i32_0 = arith.constant 0 : i32
    return %arg0, %c0_i32 : i32, i32
  }
  func.func @transform_1(%arg0: i32) -> (i32, i32) {
    %c0_i32 = arith.constant 0 : i32
    %c0_i32_0 = arith.constant 0 : i32
    %c0_i32_1 = arith.constant 0 : i32
    return %c0_i32, %c0_i32_0 : i32, i32
  }
  func.func @transform_2(%arg0: i32) -> (i32, i32) {
    %c0_i32 = arith.constant 0 : i32
    %c0_i32_0 = arith.constant 0 : i32
    %c0_i32_1 = arith.constant 0 : i32
    return %c0_i32, %c0_i32_0 : i32, i32
  }
  func.func @transform_3(%arg0: i32) -> (i32, i32) {
    %c0_i32 = arith.constant 0 : i32
    %c0_i32_0 = arith.constant 0 : i32
    return %arg0, %c0_i32 : i32, i32
  }
}

</mosaic_0001>

<llo_original>
// kernel: softmax_head.1
$region0: #{softmax_head.1}
  #allocation0 [shape = 'u32[]', space=smem, size = 0x4, offset = 0x4, fixed_abs, tag = 'smem constant byte address 0x4 - core index']
  #allocation1 [shape = 'u32[144,128]{1,0:T(1,128)}', space=vmem, size = 0x12000, scoped, tag = 'internal scratch']
  %s0 = inlined_call_operand.vmem [shape: f32[64,128], index: 0, kind: input, shape index: {}]
  %s1 = inlined_call_operand.vmem [shape: f32[128,128], index: 1, kind: input, shape index: {}]
  %s2 = inlined_call_operand.vmem [shape: f32[1,128], index: 2, kind: input, shape index: {}]
  %s3 = inlined_call_operand.vmem [shape: f32[64,128], index: 3, kind: output, shape index: {}]
  %s4 = sld [smem:[#allocation0]]
  $region45: #{softmax_head.1} parent=0
    _
  %s6 = ssub.s32 1, %s4
  %s7 = scalar_select 0, %s6, %s4
  loop: start=0, step=1, limit=6
  $region2: #{softmax_head.1} parent=0 // loop_pre_header
    _
  $region3: #{softmax_head.1} parent=0 // loop_header
    %s9 = sphi 0, %s13
    %p10 = scmp.ge.s32.totalorder %s9, 6
    %s19 = sphi 0, %s21
    %s22 = sphi 0, %s19
    %s23 = sphi 0, %s22
    %s39 = sphi 0, %s23
    %s43 = sphi 0, %s43
    %s45 = sphi 0, %s43
    %s46 = sphi 0, %s45
    %s60 = sphi 0, %s46
    %s64 = sphi 0, %s64
    %s66 = sphi 0, %s64
    %s67 = sphi 0, %s66
    %s81 = sphi 0, %s67
    %s87 = sphi 0, %s89
    %s90 = sphi 0, %s87
    %s91 = sphi 0, %s90
    %s107 = sphi 0, %s91
  $region4: #{softmax_head.1} parent=0 // loop_header_branch
    %12 = sbr.rel (%p10) target = $region8
  $region5: #{softmax_head.1} parent=0 // loop_body
    %s14 = ssub.s32 %s9, 1
    %s15 = ssub.s32 %s9, 2
    %s16 = sadd.s32 %s9, 1
    %s17 = ssub.s32 %s9, %s16
    %p18 = scmp.eq.s32.totalorder %s17, 0
    %s20 = sadd.s32 %s19, 1
    %s21 = scalar_select %p18, %s19, %s20
    %p24 = pneg %p18
    %p25 = scmp.eq.s32.totalorder %s9, 3
    %p26 = por %p24, %p25
    %p27 = scmp.ne.s32.totalorder %s19, %s22
    %p28 = scmp.eq.s32.totalorder %s9, 0
    %p29 = por %p27, %p28
    %p30 = scmp.ne.s32.totalorder %s19, %s22
    %p31 = scmp.eq.s32.totalorder %s14, 3
    %p32 = por %p30, %p31
    %p33 = scmp.ne.s32.totalorder %s22, %s23
    %p34 = scmp.eq.s32.totalorder %s14, 0
    %p35 = por %p33, %p34
    %p36 = scmp.ne.s32.totalorder %s22, %s23
    %p37 = scmp.eq.s32.totalorder %s15, 3
    %p38 = por %p36, %p37
    %p40 = scmp.ne.s32.totalorder %s23, %s39
    %p41 = scmp.eq.s32.totalorder %s15, 0
    %p42 = por %p40, %p41
    %s44 = sadd.s32 %s43, 1
    %p47 = scmp.eq.s32.totalorder %s9, 3
    %p48 = scmp.ne.s32.totalorder %s43, %s45
    %p49 = scmp.eq.s32.totalorder %s9, 0
    %p50 = por %p48, %p49
    %p51 = scmp.ne.s32.totalorder %s43, %s45
    %p52 = scmp.eq.s32.totalorder %s14, 3
    %p53 = por %p51, %p52
    %p54 = scmp.ne.s32.totalorder %s45, %s46
    %p55 = scmp.eq.s32.totalorder %s14, 0
    %p56 = por %p54, %p55
    %p57 = scmp.ne.s32.totalorder %s45, %s46
    %p58 = scmp.eq.s32.totalorder %s15, 3
    %p59 = por %p57, %p58
    %p61 = scmp.ne.s32.totalorder %s46, %s60
    %p62 = scmp.eq.s32.totalorder %s15, 0
    %p63 = por %p61, %p62
    %s65 = sadd.s32 %s64, 1
    %p68 = scmp.eq.s32.totalorder %s9, 3
    %p69 = scmp.ne.s32.totalorder %s64, %s66
    %p70 = scmp.eq.s32.totalorder %s9, 0
    %p71 = por %p69, %p70
    %p72 = scmp.ne.s32.totalorder %s64, %s66
    %p73 = scmp.eq.s32.totalorder %s14, 3
    %p74 = por %p72, %p73
    %p75 = scmp.ne.s32.totalorder %s66, %s67
    %p76 = scmp.eq.s32.totalorder %s14, 0
    %p77 = por %p75, %p76
    %p78 = scmp.ne.s32.totalorder %s66, %s67
    %p79 = scmp.eq.s32.totalorder %s15, 3
    %p80 = por %p78, %p79
    %p82 = scmp.ne.s32.totalorder %s67, %s81
    %p83 = scmp.eq.s32.totalorder %s15, 0
    %p84 = por %p82, %p83
    %s85 = ssub.s32 %s9, %s16
    %p86 = scmp.eq.s32.totalorder %s85, 0
    %s88 = sadd.s32 %s87, 1
    %s89 = scalar_select %p86, %s87, %s88
    %p92 = pneg %p86
    %p93 = scmp.eq.s32.totalorder %s9, 3
    %p94 = por %p92, %p93
    %p95 = scmp.ne.s32.totalorder %s87, %s90
    %p96 = scmp.eq.s32.totalorder %s9, 0
    %p97 = por %p95, %p96
    %p98 = scmp.ne.s32.totalorder %s87, %s90
    %p99 = scmp.eq.s32.totalorder %s14, 3
    %p100 = por %p98, %p99
    %p101 = scmp.ne.s32.totalorder %s90, %s91
    %p102 = scmp.eq.s32.totalorder %s14, 0
    %p103 = por %p101, %p102
    %p104 = scmp.ne.s32.totalorder %s90, %s91
    %p105 = scmp.eq.s32.totalorder %s15, 3
    %p106 = por %p104, %p105
    %p108 = scmp.ne.s32.totalorder %s91, %s107
    %p109 = scmp.eq.s32.totalorder %s15, 0
    %p110 = por %p108, %p109
    %p111 = scmp.le.s32.totalorder 1, %s9
    %p112 = scmp.lt.s32.totalorder %s9, 5
    %p113 = pnand %p111, %p112
    %p114 = pneg %p113
    // Predicated region
    $region9: #{softmax_head.1} parent=5 // pred_check
      _
    $region10: #{softmax_head.1} parent=5 // pred_check_branch
      %116 = sbr.rel (%p113) target = $region12
    $region11: #{softmax_head.1} parent=5 // pred_region
      %s117 = ssub.s32 %s9, 1
      // Predicated region
      $region13: #{softmax_head.1} parent=11 // pred_check
        %p118 = pneg %p56
      $region14: #{softmax_head.1} parent=11 // pred_check_branch
        %120 = sbr.rel (%p118) target = $region16
      $region15: #{softmax_head.1} parent=11 // pred_region
        _
      $region16: #{softmax_head.1} parent=11 // pred_fallthru
        _
      // Predicated region
      $region17: #{softmax_head.1} parent=11 // pred_check
        %p121 = pneg %p77
      $region18: #{softmax_head.1} parent=11 // pred_check_branch
        %123 = sbr.rel (%p121) target = $region20
      $region19: #{softmax_head.1} parent=11 // pred_region
        _
      $region20: #{softmax_head.1} parent=11 // pred_fallthru
        _
    $region12: #{softmax_head.1} parent=5 // pred_fallthru
      _
    %p124 = scmp.lt.s32.totalorder %s9, 4
    // Predicated region
    $region21: #{softmax_head.1} parent=5 // pred_check
      %p125 = pneg %p124
    $region22: #{softmax_head.1} parent=5 // pred_check_branch
      %127 = sbr.rel (%p125) target = $region24
    $region23: #{softmax_head.1} parent=5 // pred_region
      // Predicated region
      $region25: #{softmax_head.1} parent=23 // pred_check
        %p128 = pneg %p29
      $region26: #{softmax_head.1} parent=23 // pred_check_branch
        %130 = sbr.rel (%p128) target = $region28
      $region27: #{softmax_head.1} parent=23 // pred_region
        %s131 = smul.u32 2, %s9
        %p132 = scmp.lt.s32.totalorder %s131, 7
        %s133 = scalar_select %p132, %s131, 7
        %s134 = smul.addr %s133, 8
        %s135 = scalar_lea.vmem %s0, %s134
        %s136 = smul.u32 2, %s9
      $region28: #{softmax_head.1} parent=23 // pred_fallthru
        _
    $region24: #{softmax_head.1} parent=5 // pred_fallthru
      _
    %p137 = scmp.le.s32.totalorder 1, %s9
    %p138 = scmp.lt.s32.totalorder %s9, 5
    %p139 = pnand %p137, %p138
    %p140 = pneg %p139
    // Predicated region
    $region29: #{softmax_head.1} parent=5 // pred_check
      _
    $region30: #{softmax_head.1} parent=5 // pred_check_branch
      %142 = sbr.rel (%p139) target = $region32
    $region31: #{softmax_head.1} parent=5 // pred_region
      %s143 = ssub.s32 %s9, 1
      %s144 = smul.u32 2, %s14
      %p145 = scmp.lt.s32.totalorder %s144, 7
      %s146 = scalar_select %p145, %s144, 7
      %s147 = smul.addr %s146, 8
      %s148 = scalar_lea.vmem %s0, %s147
      %p149 = pneg %p35
      %p150 = pneg %p32
      %p151 = pneg %p56
      %p152 = pneg %p53
      %p153 = pneg %p77
      %p154 = pneg %p74
      %p155 = pneg %p103
      %p156 = pneg %p100
      %s157 = smul.u32 2, %s14
      %p158 = scmp.lt.s32.totalorder %s157, 7
      %s159 = scalar_select %p158, %s157, 7
      %s160 = smul.addr %s159, 8
      %s161 = scalar_lea.vmem %s3, %s160
      %s162 = smul.u32 2, %s14
      %p163 = scmp.lt.s32.totalorder %s162, 7
      %s164 = scalar_select %p163, %s162, 7
      %s165 = smul.addr %s164, 8
      %s166 = scalar_lea.vmem %s0, %s165
      %s167 = smul.u32 2, %s14
      %s168 = smul.u32 2, %s14
      %p169 = scmp.lt.s32.totalorder %s168, 7
      %s170 = scalar_select %p169, %s168, 7
      %s171 = smul.addr %s170, 8
      %s172 = scalar_lea.vmem %s3, %s171
      %s173 = smul.u32 2, %s14
      %v174 = vld [vmem:[%s166] sm:$0xff]
      %v175 = vld [vmem:[%s166 + $0x8] sm:$0xff]
      %v176 = vld [vmem:[%s1] sm:$0xff]
      %v177 = vld [vmem:[%s1 + $0x8] sm:$0xff]
      %v178 = vld [vmem:[%s1 + $0x10] sm:$0xff]
      %v179 = vld [vmem:[%s1 + $0x18] sm:$0xff]
      %v180 = vld [vmem:[%s1 + $0x20] sm:$0xff]
      %v181 = vld [vmem:[%s1 + $0x28] sm:$0xff]
      %v182 = vld [vmem:[%s1 + $0x30] sm:$0xff]
      %v183 = vld [vmem:[%s1 + $0x38] sm:$0xff]
      %v184 = vld [vmem:[%s1 + $0x40] sm:$0xff]
      %v185 = vld [vmem:[%s1 + $0x48] sm:$0xff]
      %v186 = vld [vmem:[%s1 + $0x50] sm:$0xff]
      %v187 = vld [vmem:[%s1 + $0x58] sm:$0xff]
      %v188 = vld [vmem:[%s1 + $0x60] sm:$0xff]
      %v189 = vld [vmem:[%s1 + $0x68] sm:$0xff]
      %v190 = vld [vmem:[%s1 + $0x70] sm:$0xff]
      %v191 = vld [vmem:[%s1 + $0x78] sm:$0xff]
      %v192 = vld [vmem:[%s2] sm:$0x1]
      %v194 = vlaneseq
      %v195 = vshrl.u32 %v194, 7
      %v196 = vsub.s32 0, %v195
      %v197 = vrot.slane %v192, %v196
      %199 = vmatprep.subr.mxu0 0.0
      %200 = vmatpush1.msra.mxu0 %v176
      %201 = vmatprep.subr.mxu0 0.0
      %202 = vmatpush1.msra.mxu0 %v177
      %203 = vmatprep.subr.mxu0 0.0
      %204 = vmatpush1.msra.mxu0 %v178
      %205 = vmatprep.subr.mxu0 0.0
      %206 = vmatpush1.msra.mxu0 %v179
      %207 = vmatprep.subr.mxu0 0.0
      %208 = vmatpush1.msra.mxu0 %v180
      %209 = vmatprep.subr.mxu0 0.0
      %210 = vmatpush1.msra.mxu0 %v181
      %211 = vmatprep.subr.mxu0 0.0
      %212 = vmatpush1.msra.mxu0 %v182
      %213 = vmatprep.subr.mxu0 0.0
      %214 = vmatpush1.msra.mxu0 %v183
      %215 = vmatprep.subr.mxu0 0.0
      %216 = vmatpush1.msra.mxu0 %v184
      %217 = vmatprep.subr.mxu0 0.0
      %218 = vmatpush1.msra.mxu0 %v185
      %219 = vmatprep.subr.mxu0 0.0
      %220 = vmatpush1.msra.mxu0 %v186
      %221 = vmatprep.subr.mxu0 0.0
      %222 = vmatpush1.msra.mxu0 %v187
      %223 = vmatprep.subr.mxu0 0.0
      %224 = vmatpush1.msra.mxu0 %v188
      %225 = vmatprep.subr.mxu0 0.0
      %226 = vmatpush1.msra.mxu0 %v189
      %227 = vmatprep.subr.mxu0 0.0
      %228 = vmatpush1.msra.mxu0 %v190
      %229 = vmatprep.subr.mxu0 0.0
      %230 = vmatpush1.msra.mxu0 %v191
      %231 = vmatprep.subr.mxu0 0.0
      %232 = vmatpush1.msra.mxu0 0.0
      %233 = vmatprep.subr.mxu0 0.0
      %234 = vmatpush1.msra.mxu0 0.0
      %235 = vmatprep.subr.mxu0 0.0
      %236 = vmatpush1.msra.mxu0 0.0
      %237 = vmatprep.subr.mxu0 0.0
      %238 = vmatpush1.msra.mxu0 0.0
      %239 = vmatprep.subr.mxu0 0.0
      %240 = vmatpush1.msra.mxu0 0.0
      %241 = vmatprep.subr.mxu0 0.0
      %242 = vmatpush1.msra.mxu0 0.0
      %243 = vmatprep.subr.mxu0 0.0
      %244 = vmatpush1.msra.mxu0 0.0
      %245 = vmatprep.subr.mxu0 0.0
      %246 = vmatpush1.msra.mxu0 0.0
      %247 = vmatprep.subr.mxu0 0.0
      %248 = vmatpush1.msra.mxu0 0.0
      %249 = vmatprep.subr.mxu0 0.0
      %250 = vmatpush1.msra.mxu0 0.0
      %251 = vmatprep.subr.mxu0 0.0
      %252 = vmatpush1.msra.mxu0 0.0
      %253 = vmatprep.subr.mxu0 0.0
      %254 = vmatpush1.msra.mxu0 0.0
      %255 = vmatprep.subr.mxu0 0.0
      %256 = vmatpush1.msra.mxu0 0.0
      %257 = vmatprep.subr.mxu0 0.0
      %258 = vmatpush1.msra.mxu0 0.0
      %259 = vmatprep.subr.mxu0 0.0
      %260 = vmatpush1.msra.mxu0 0.0
      %261 = vmatprep.subr.mxu0 0.0
      %262 = vmatpush1.msra.mxu0 0.0
      %263 = vmatprep.mubr.f32.mxu0 0.0
      %264 = vmatmul.mubr.f32.gmra.mrb[0].mxu0 %v174
      %v265 = vpop.f32.mrb[0].mxu0
      %v266 = vadd.f32 %v197, %v265
      %v267 = vpop.f32.mrb[0].mxu0
      %268 = vmatprep.mubr.f32.mxu0 0.0
      %269 = vmatmul.mubr.f32.gmra.mrb[0].mxu0 %v175
      %v270 = vpop.f32.mrb[0].mxu0
      %v271 = vadd.f32 %v197, %v270
      %v272 = vpop.f32.mrb[0].mxu0
      %273 = vdwg.mxu0
      %274 = vmax.xlane.f32.xlu0 %v266
      %v275 = vpop.xlane.xlu0 %274
      %276 = vmax.xlane.f32.xlu0 %v271
      %v277 = vpop.xlane.xlu0 %276
      %v278 = vsub.f32 %v266, %v275
      %v279 = vsub.f32 %v271, %v277
      %v280 = vmul.f32 %v278, 1.442695
      %v281 = vpow.pop %v280
      %v282 = vmul.f32 %v279, 1.442695
      %v283 = vpow.pop %v282
      %284 = vadd.xlane.f32.xlu0 %v281
      %v285 = vpop.xlane.xlu0 %284
      %286 = vadd.xlane.f32.xlu0 %v283
      %v287 = vpop.xlane.xlu0 %286
      %v288 = vlog2.pop %v285
      %v289 = vmul.f32 %v288, 0.6931472
      %v290 = vlog2.pop %v287
      %v291 = vmul.f32 %v290, 0.6931472
      %v292 = vadd.f32 %v275, %v289
      %v293 = vadd.f32 %v277, %v291
      %v294 = vsub.f32 %v266, %v292
      %v295 = vsub.f32 %v271, %v293
      %296 = vst [vmem:[%s172] sm:$0xff] %v294
      %297 = vst [vmem:[%s172 + $0x8] sm:$0xff] %v295
      %s298 = smul.u32 2, %s14
      %p299 = scmp.lt.s32.totalorder %s298, 7
      %s300 = scalar_select %p299, %s298, 7
      %s301 = smul.addr %s300, 8
      %s302 = scalar_lea.vmem %s3, %s301
      // Predicated region
      $region33: #{softmax_head.1} parent=31 // pred_check
        %p303 = pneg %p100
      $region34: #{softmax_head.1} parent=31 // pred_check_branch
        %305 = sbr.rel (%p303) target = $region36
      $region35: #{softmax_head.1} parent=31 // pred_region
        %s306 = smul.u32 2, %s14
      $region36: #{softmax_head.1} parent=31 // pred_fallthru
        _
    $region32: #{softmax_head.1} parent=5 // pred_fallthru
      _
    %p307 = scmp.le.s32.totalorder 2, %s9
    // Predicated region
    $region37: #{softmax_head.1} parent=5 // pred_check
      %p308 = pneg %p307
    $region38: #{softmax_head.1} parent=5 // pred_check_branch
      %310 = sbr.rel (%p308) target = $region40
    $region39: #{softmax_head.1} parent=5 // pred_region
      %s311 = ssub.s32 %s9, 2
      // Predicated region
      $region41: #{softmax_head.1} parent=39 // pred_check
        %p312 = pneg %p106
      $region42: #{softmax_head.1} parent=39 // pred_check_branch
        %314 = sbr.rel (%p312) target = $region44
      $region43: #{softmax_head.1} parent=39 // pred_region
        %s315 = smul.u32 2, %s15
        %p316 = scmp.lt.s32.totalorder %s315, 7
        %s317 = scalar_select %p316, %s315, 7
        %s318 = smul.addr %s317, 8
        %s319 = scalar_lea.vmem %s3, %s318
      $region44: #{softmax_head.1} parent=39 // pred_fallthru
        _
    $region40: #{softmax_head.1} parent=5 // pred_fallthru
      _
  $region6: #{softmax_head.1} parent=0 // loop_footer
    %s13 = sadd.s32 1, %s9
  $region7: #{softmax_head.1} parent=0 // loop_footer_branch
    %8 = sbr.rel target = $region3
  $region8: #{softmax_head.1} parent=0 // loop_exit
    _

</llo_original>
